<compile_context>
chip_gen: v5e
topology: v5e:2x2
jax: 0.10.0
libtpu: 0.0.40
codegen_flags: <defaults>
</compile_context>

<pallas_src>
import jax
import jax.numpy as jnp
from jax.experimental import pallas as pl
from jax.experimental.pallas import tpu as pltpu

INPUT_SIZE = 28
HIDDEN = 64
NUM_CLASSES = 10
OUT_PAD = 128  # lane-dense padded width of the classifier head output


def lstm_head_kernel(x_ref, wih_ref, whh_ref, b_ref, wout_ref, bout_ref, out_ref):
    # x_ref: (T, B, IN) time-major block.  Weights are pre-transposed, gate-column
    # reordered to [i | g | f | o] and pre-scaled (0.5 on i/f/o) by the wrapper.
    # whh_ref: (2H, 4H) with the bottom H rows zero -> accepts the duplicated
    #          [h | h] hidden state directly (no per-step 64-wide slice).
    # wout_ref: (2H, OUT_PAD) with the bottom H rows zero, same reason.
    T, B, IN = x_ref.shape
    G = wih_ref.shape[1]
    H = G // 4

    # ---- hoisted input projection: ONE (T*B, IN) @ (IN, 4H) matmul + bias ----
    x_all = x_ref[...].reshape(T * B, IN).astype(jnp.bfloat16)
    wih = wih_ref[...].astype(jnp.bfloat16)
    xproj = jnp.dot(x_all, wih, preferred_element_type=jnp.float32) + b_ref[...]  # (T*B, G) f32

    whh = whh_ref[...].astype(jnp.bfloat16)                 # (2H, 4H) bf16 for MXU
    wout = wout_ref[...].astype(jnp.bfloat16)               # (2H, OUT_PAD)

    # Hoisted lane masks (broadcasted_iota; computed once, outside the loop).
    col = jax.lax.broadcasted_iota(jnp.int32, (B, G), 1)
    g_mask = (col >= H) & (col < 2 * H)                     # lanes of the g (tanh) gate
    col2 = jax.lax.broadcasted_iota(jnp.int32, (B, 2 * H), 1)
    lo_mask = col2 < H                                      # low half of a 128-lane pair

    c = jnp.zeros((B, 2 * H), jnp.float32)                  # duplicated cell state  [c | c]
    h = jnp.zeros((B, 2 * H), jnp.float32)                  # duplicated hidden state [h | h]

    # T is a small static trip count -> unrolled Python loop (static slices,
    # full LLO scheduler visibility).
    for t in range(T):
        # Only this (B, 2H) @ (2H, 4H) matmul sits on the serial critical path
        # (same MXU cost as (B, H) @ (H, 4H): K pads to 128 anyway).
        pre = xproj[t * B:(t + 1) * B, :] + jnp.dot(
            h.astype(jnp.bfloat16), whh, preferred_element_type=jnp.float32
        )                                                   # (B, 4H) f32

        # One full-width tanh; sigmoid recovered by a lane-masked affine because
        # the 0.5 pre-scale is already folded into the i/f/o columns.
        th = jnp.tanh(pre)
        act = jnp.where(g_mask, th, 0.5 * th + 0.5)         # [i | g | f | o]

        ig = act[:, 0:2 * H]                                # lane-tile aligned slice: [i | g]
        fo = act[:, 2 * H:4 * H]                            # lane-tile aligned slice: [f | o]
        ig_sw = pltpu.roll(ig, shift=H, axis=1)             # [g | i]   (XLU, off VALU slot)
        fo_sw = pltpu.roll(fo, shift=H, axis=1)             # [o | f]

        i_g = ig * ig_sw                                    # [i*g | i*g]
        f_w = jnp.where(lo_mask, fo, fo_sw)                 # [f | f]
        o_w = jnp.where(lo_mask, fo_sw, fo)                 # [o | o]

        c = f_w * c + i_g                                   # [c | c]  (f32 state)
        h = o_w * jnp.tanh(c)                               # [h | h]  stays duplicated

    # Classifier head on the last hidden state; lane-dense 128-wide output
    # (real logits in columns [0:10], zero-padded weights elsewhere).
    out_ref[...] = (
        jnp.dot(h.astype(jnp.bfloat16), wout, preferred_element_type=jnp.float32)
        + bout_ref[...]
    )


def _reorder_and_prescale(m, H):
    """m: (K, 4H) with PyTorch column blocks [i, f, g, o].
    Returns columns reordered to [i, g, f, o] with a 0.5 pre-scale folded into
    the sigmoid gates (i, f, o) so that sigmoid(z) = 0.5*tanh(z/2) + 0.5."""
    i = m[:, 0 * H:1 * H]
    f = m[:, 1 * H:2 * H]
    g = m[:, 2 * H:3 * H]
    o = m[:, 3 * H:4 * H]
    return jnp.concatenate([0.5 * i, g, 0.5 * f, 0.5 * o], axis=-1)


def rnn_forward(x, w_ih, w_hh, b_ih, b_hh, w_out, b_out):
    """x: (B, T, INPUT_SIZE) batch_first.  Weights in PyTorch layout:
       w_ih (4H, IN), w_hh (4H, H), b_ih/b_hh (4H,), w_out (10, H), b_out (10,)."""
    B, T, IN = x.shape
    H = w_hh.shape[1]

    # ---- weight prep (all outside the kernel) ----
    wih_t = _reorder_and_prescale(jnp.transpose(w_ih).astype(jnp.float32), H)    # (IN, 4H)
    whh_t = _reorder_and_prescale(jnp.transpose(w_hh).astype(jnp.float32), H)    # (H, 4H)
    bias = _reorder_and_prescale(
        (b_ih + b_hh).reshape(1, -1).astype(jnp.float32), H)                     # (1, 4H)

    # Zero-pad the contraction dim to 2H so the kernel can feed the duplicated
    # [h | h] state straight into the MXU (bottom H rows contribute nothing).
    whh_dup = jnp.concatenate([whh_t, jnp.zeros((H, 4 * H), jnp.float32)], axis=0)  # (2H, 4H)

    wout_t = jnp.zeros((H, OUT_PAD), jnp.float32).at[:, :NUM_CLASSES].set(
        jnp.transpose(w_out).astype(jnp.float32))                                # (H, 128)
    wout_dup = jnp.concatenate(
        [wout_t, jnp.zeros((H, OUT_PAD), jnp.float32)], axis=0)                  # (2H, 128)
    bout = jnp.zeros((1, OUT_PAD), jnp.float32).at[:, :NUM_CLASSES].set(
        b_out.astype(jnp.float32))                                               # (1, 128)

    # ---- batch padding / tiling (fill f32 sublanes; tile + grid for large B) ----
    if B <= 128:
        B_pad = max(8, ((B + 7) // 8) * 8)
        B_tile = B_pad
    else:
        B_tile = 128
        B_pad = ((B + B_tile - 1) // B_tile) * B_tile
    grid = (B_pad // B_tile,)

    x_p = jnp.zeros((B_pad, T, IN), jnp.float32).at[:B].set(x.astype(jnp.float32))
    x_tbi = jnp.transpose(x_p, (1, 0, 2))                   # time-major: (T, B_pad, IN)

    out_pad = pl.pallas_call(
        lstm_head_kernel,
        out_shape=jax.ShapeDtypeStruct((B_pad, OUT_PAD), jnp.float32),
        grid_spec=pltpu.PrefetchScalarGridSpec(
            num_scalar_prefetch=0,
            grid=grid,
            in_specs=[
                pl.BlockSpec((T, B_tile, IN), lambda b: (0, b, 0)),
                pl.BlockSpec((IN, 4 * H), lambda b: (0, 0)),
                pl.BlockSpec((2 * H, 4 * H), lambda b: (0, 0)),
                pl.BlockSpec((1, 4 * H), lambda b: (0, 0)),
                pl.BlockSpec((2 * H, OUT_PAD), lambda b: (0, 0)),
                pl.BlockSpec((1, OUT_PAD), lambda b: (0, 0)),
            ],
            out_specs=pl.BlockSpec((B_tile, OUT_PAD), lambda b: (b, 0)),
        ),
        compiler_params=pltpu.CompilerParams(
            dimension_semantics=("parallel",)),
    )(x_tbi, wih_t, whh_dup, bias, wout_dup, bout)

    return out_pad[:B, :NUM_CLASSES]


def rnn_forward_ref(x, w_ih, w_hh, b_ih, b_hh, w_out, b_out):
    """Pure-JAX f32 reference mirroring torch.nn.LSTM + Linear semantics."""
    B, T, _ = x.shape
    H = w_hh.shape[1]
    h = jnp.zeros((B, H), jnp.float32)
    c = jnp.zeros((B, H), jnp.float32)
    for t in range(T):
        gates = x[:, t, :] @ w_ih.T + b_ih + h @ w_hh.T + b_hh
        i_g = jax.nn.sigmoid(gates[:, 0 * H:1 * H])
        f_g = jax.nn.sigmoid(gates[:, 1 * H:2 * H])
        g_g = jnp.tanh(gates[:, 2 * H:3 * H])
        o_g = jax.nn.sigmoid(gates[:, 3 * H:4 * H])
        c = f_g * c + i_g * g_g
        h = o_g * jnp.tanh(c)
    return h @ w_out.T + b_out


if __name__ == "__main__":
    B, T = 2, 8  # small batch / seq; input_size fixed at 28 by the module

    key = jax.random.PRNGKey(0)
    ks = jax.random.split(key, 7)
    k_lstm = 1.0 / jnp.sqrt(HIDDEN)   # PyTorch default init range for LSTM
    k_lin = 1.0 / jnp.sqrt(HIDDEN)    # and for Linear(64, 10)

    x = jax.random.normal(ks[0], (B, T, INPUT_SIZE), jnp.float32)
    w_ih = jax.random.uniform(ks[1], (4 * HIDDEN, INPUT_SIZE), jnp.float32, -k_lstm, k_lstm)
    w_hh = jax.random.uniform(ks[2], (4 * HIDDEN, HIDDEN), jnp.float32, -k_lstm, k_lstm)
    b_ih = jax.random.uniform(ks[3], (4 * HIDDEN,), jnp.float32, -k_lstm, k_lstm)
    b_hh = jax.random.uniform(ks[4], (4 * HIDDEN,), jnp.float32, -k_lstm, k_lstm)
    w_out = jax.random.uniform(ks[5], (NUM_CLASSES, HIDDEN), jnp.float32, -k_lin, k_lin)
    b_out = jax.random.uniform(ks[6], (NUM_CLASSES,), jnp.float32, -k_lin, k_lin)

    out = rnn_forward(x, w_ih, w_hh, b_ih, b_hh, w_out, b_out)
    out = jax.block_until_ready(out)

    ref = rnn_forward_ref(x, w_ih, w_hh, b_ih, b_hh, w_out, b_out)
    assert out.shape == (B, NUM_CLASSES)
    # bf16 MXU operands (f32 state / accumulation) -> ~1e-2-level differences expected.
    assert jnp.allclose(out, ref, atol=5e-2, rtol=5e-2), (
        f"mismatch vs reference: max abs diff = {jnp.max(jnp.abs(out - ref))}")

    print("KERNEL_OK")
</pallas_src>

<mosaic_0001>
module attributes {stable_mosaic.version = 11 : i64} {
  func.func @lstm_head_kernel(%arg0: i32, %arg1: memref<8x8x28xf32, #tpu.memory_space<vmem>>, %arg2: memref<28x256xf32, #tpu.memory_space<vmem>>, %arg3: memref<128x256xf32, #tpu.memory_space<vmem>>, %arg4: memref<1x256xf32, #tpu.memory_space<vmem>>, %arg5: memref<128x128xf32, #tpu.memory_space<vmem>>, %arg6: memref<1x128xf32, #tpu.memory_space<vmem>>, %arg7: memref<8x128xf32, #tpu.memory_space<vmem>>) attributes {dimension_semantics = [#tpu.dimension_semantics<parallel>], iteration_bounds = array<i64: 1>, scalar_prefetch = 0 : i64, scratch_operands = 0 : i64, tpu.core_type = #tpu.core_type<tc>, window_params = [{transform_indices = @transform_0, window_bounds = array<i64: 8, 8, 28>}, {pipeline_mode = #tpu.pipeline_mode<synchronous>, transform_indices = @transform_1, window_bounds = array<i64: 28, 256>}, {pipeline_mode = #tpu.pipeline_mode<synchronous>, transform_indices = @transform_2, window_bounds = array<i64: 128, 256>}, {pipeline_mode = #tpu.pipeline_mode<synchronous>, transform_indices = @transform_3, window_bounds = array<i64: 1, 256>}, {pipeline_mode = #tpu.pipeline_mode<synchronous>, transform_indices = @transform_4, window_bounds = array<i64: 128, 128>}, {pipeline_mode = #tpu.pipeline_mode<synchronous>, transform_indices = @transform_5, window_bounds = array<i64: 1, 128>}, {transform_indices = @transform_6, window_bounds = array<i64: 8, 128>}]} {
    %c0 = arith.constant 0 : index
    %c0_0 = arith.constant 0 : index
    %c0_1 = arith.constant 0 : index
    %0 = vector.load %arg1[%c0, %c0_0, %c0_1] : memref<8x8x28xf32, #tpu.memory_space<vmem>>, vector<8x8x28xf32>
    %1 = vector.shape_cast %0 : vector<8x8x28xf32> to vector<64x28xf32>
    %2 = arith.truncf %1 : vector<64x28xf32> to vector<64x28xbf16>
    %c0_2 = arith.constant 0 : index
    %c0_3 = arith.constant 0 : index
    %3 = vector.load %arg2[%c0_2, %c0_3] : memref<28x256xf32, #tpu.memory_space<vmem>>, vector<28x256xf32>
    %4 = arith.truncf %3 : vector<28x256xf32> to vector<28x256xbf16>
    %cst = arith.constant dense<0.000000e+00> : vector<64x256xf32>
    %5 = tpu.matmul %2, %4, %cst {dimension_numbers = #tpu.dot_dimension_numbers<[1], [0], [0], [1], [0, 0, 1, 1], [], []>} : vector<64x28xbf16>, vector<28x256xbf16>, vector<64x256xf32> -> vector<64x256xf32>
    %c0_4 = arith.constant 0 : index
    %c0_5 = arith.constant 0 : index
    %6 = vector.load %arg4[%c0_4, %c0_5] : memref<1x256xf32, #tpu.memory_space<vmem>>, vector<1x256xf32>
    %7 = vector.broadcast %6 : vector<1x256xf32> to vector<64x256xf32>
    %8 = arith.addf %5, %7 : vector<64x256xf32>
    %c0_6 = arith.constant 0 : index
    %c0_7 = arith.constant 0 : index
    %9 = vector.load %arg3[%c0_6, %c0_7] : memref<128x256xf32, #tpu.memory_space<vmem>>, vector<128x256xf32>
    %10 = arith.truncf %9 : vector<128x256xf32> to vector<128x256xbf16>
    %c0_8 = arith.constant 0 : index
    %c0_9 = arith.constant 0 : index
    %11 = vector.load %arg5[%c0_8, %c0_9] : memref<128x128xf32, #tpu.memory_space<vmem>>, vector<128x128xf32>
    %12 = arith.truncf %11 : vector<128x128xf32> to vector<128x128xbf16>
    %13 = tpu.iota {dimensions = array<i32: 1>} : vector<8x256xi32>
    %c64_i32 = arith.constant 64 : i32
    %14 = vector.broadcast %c64_i32 : i32 to vector<8x256xi32>
    %15 = arith.cmpi sge, %13, %14 : vector<8x256xi32>
    %c128_i32 = arith.constant 128 : i32
    %16 = vector.broadcast %c128_i32 : i32 to vector<8x256xi32>
    %17 = arith.cmpi slt, %13, %16 : vector<8x256xi32>
    %18 = arith.andi %15, %17 : vector<8x256xi1>
    %19 = tpu.iota {dimensions = array<i32: 1>} : vector<8x128xi32>
    %c64_i32_10 = arith.constant 64 : i32
    %20 = vector.broadcast %c64_i32_10 : i32 to vector<8x128xi32>
    %21 = arith.cmpi slt, %19, %20 : vector<8x128xi32>
    %cst_11 = arith.constant 0.000000e+00 : f32
    %22 = vector.broadcast %cst_11 : f32 to vector<8x128xf32>
    %cst_12 = arith.constant 0.000000e+00 : f32
    %23 = vector.broadcast %cst_12 : f32 to vector<8x128xf32>
    %24 = vector.extract_strided_slice %8 {offsets = [0, 0], sizes = [8, 256], strides = [1, 1]} : vector<64x256xf32> to vector<8x256xf32>
    %25 = arith.truncf %23 : vector<8x128xf32> to vector<8x128xbf16>
    %cst_13 = arith.constant dense<0.000000e+00> : vector<8x256xf32>
    %26 = tpu.matmul %25, %10, %cst_13 {dimension_numbers = #tpu.dot_dimension_numbers<[1], [0], [0], [1], [0, 0, 1, 1], [], []>} : vector<8x128xbf16>, vector<128x256xbf16>, vector<8x256xf32> -> vector<8x256xf32>
    %27 = arith.addf %24, %26 : vector<8x256xf32>
    %28 = math.tanh %27 : vector<8x256xf32>
    %cst_14 = arith.constant 5.000000e-01 : f32
    %29 = vector.broadcast %cst_14 : f32 to vector<8x256xf32>
    %30 = arith.mulf %29, %28 : vector<8x256xf32>
    %cst_15 = arith.constant 5.000000e-01 : f32
    %31 = vector.broadcast %cst_15 : f32 to vector<8x256xf32>
    %32 = arith.addf %30, %31 : vector<8x256xf32>
    %33 = arith.select %18, %28, %32 : vector<8x256xi1>, vector<8x256xf32>
    %34 = vector.extract_strided_slice %33 {offsets = [0, 0], sizes = [8, 128], strides = [1, 1]} : vector<8x256xf32> to vector<8x128xf32>
    %35 = vector.extract_strided_slice %33 {offsets = [0, 128], sizes = [8, 128], strides = [1, 1]} : vector<8x256xf32> to vector<8x128xf32>
    %c64_i32_16 = arith.constant 64 : i32
    %36 = tpu.dynamic_rotate %34 by %c64_i32_16 dim 1 : vector<8x128xf32>, i32 -> vector<8x128xf32>
    %c64_i32_17 = arith.constant 64 : i32
    %37 = tpu.dynamic_rotate %35 by %c64_i32_17 dim 1 : vector<8x128xf32>, i32 -> vector<8x128xf32>
    %38 = arith.mulf %34, %36 : vector<8x128xf32>
    %39 = arith.select %21, %35, %37 : vector<8x128xi1>, vector<8x128xf32>
    %40 = arith.select %21, %37, %35 : vector<8x128xi1>, vector<8x128xf32>
    %41 = arith.mulf %39, %22 : vector<8x128xf32>
    %42 = arith.addf %41, %38 : vector<8x128xf32>
    %43 = math.tanh %42 : vector<8x128xf32>
    %44 = arith.mulf %40, %43 : vector<8x128xf32>
    %45 = vector.extract_strided_slice %8 {offsets = [8, 0], sizes = [8, 256], strides = [1, 1]} : vector<64x256xf32> to vector<8x256xf32>
    %46 = arith.truncf %44 : vector<8x128xf32> to vector<8x128xbf16>
    %cst_18 = arith.constant dense<0.000000e+00> : vector<8x256xf32>
    %47 = tpu.matmul %46, %10, %cst_18 {dimension_numbers = #tpu.dot_dimension_numbers<[1], [0], [0], [1], [0, 0, 1, 1], [], []>} : vector<8x128xbf16>, vector<128x256xbf16>, vector<8x256xf32> -> vector<8x256xf32>
    %48 = arith.addf %45, %47 : vector<8x256xf32>
    %49 = math.tanh %48 : vector<8x256xf32>
    %cst_19 = arith.constant 5.000000e-01 : f32
    %50 = vector.broadcast %cst_19 : f32 to vector<8x256xf32>
    %51 = arith.mulf %50, %49 : vector<8x256xf32>
    %cst_20 = arith.constant 5.000000e-01 : f32
    %52 = vector.broadcast %cst_20 : f32 to vector<8x256xf32>
    %53 = arith.addf %51, %52 : vector<8x256xf32>
    %54 = arith.select %18, %49, %53 : vector<8x256xi1>, vector<8x256xf32>
    %55 = vector.extract_strided_slice %54 {offsets = [0, 0], sizes = [8, 128], strides = [1, 1]} : vector<8x256xf32> to vector<8x128xf32>
    %56 = vector.extract_strided_slice %54 {offsets = [0, 128], sizes = [8, 128], strides = [1, 1]} : vector<8x256xf32> to vector<8x128xf32>
    %c64_i32_21 = arith.constant 64 : i32
    %57 = tpu.dynamic_rotate %55 by %c64_i32_21 dim 1 : vector<8x128xf32>, i32 -> vector<8x128xf32>
    %c64_i32_22 = arith.constant 64 : i32
    %58 = tpu.dynamic_rotate %56 by %c64_i32_22 dim 1 : vector<8x128xf32>, i32 -> vector<8x128xf32>
    %59 = arith.mulf %55, %57 : vector<8x128xf32>
    %60 = arith.select %21, %56, %58 : vector<8x128xi1>, vector<8x128xf32>
    %61 = arith.select %21, %58, %56 : vector<8x128xi1>, vector<8x128xf32>
    %62 = arith.mulf %60, %42 : vector<8x128xf32>
    %63 = arith.addf %62, %59 : vector<8x128xf32>
    %64 = math.tanh %63 : vector<8x128xf32>
    %65 = arith.mulf %61, %64 : vector<8x128xf32>
    %66 = vector.extract_strided_slice %8 {offsets = [16, 0], sizes = [8, 256], strides = [1, 1]} : vector<64x256xf32> to vector<8x256xf32>
    %67 = arith.truncf %65 : vector<8x128xf32> to vector<8x128xbf16>
    %cst_23 = arith.constant dense<0.000000e+00> : vector<8x256xf32>
    %68 = tpu.matmul %67, %10, %cst_23 {dimension_numbers = #tpu.dot_dimension_numbers<[1], [0], [0], [1], [0, 0, 1, 1], [], []>} : vector<8x128xbf16>, vector<128x256xbf16>, vector<8x256xf32> -> vector<8x256xf32>
    %69 = arith.addf %66, %68 : vector<8x256xf32>
    %70 = math.tanh %69 : vector<8x256xf32>
    %cst_24 = arith.constant 5.000000e-01 : f32
    %71 = vector.broadcast %cst_24 : f32 to vector<8x256xf32>
    %72 = arith.mulf %71, %70 : vector<8x256xf32>
    %cst_25 = arith.constant 5.000000e-01 : f32
    %73 = vector.broadcast %cst_25 : f32 to vector<8x256xf32>
    %74 = arith.addf %72, %73 : vector<8x256xf32>
    %75 = arith.select %18, %70, %74 : vector<8x256xi1>, vector<8x256xf32>
    %76 = vector.extract_strided_slice %75 {offsets = [0, 0], sizes = [8, 128], strides = [1, 1]} : vector<8x256xf32> to vector<8x128xf32>
    %77 = vector.extract_strided_slice %75 {offsets = [0, 128], sizes = [8, 128], strides = [1, 1]} : vector<8x256xf32> to vector<8x128xf32>
    %c64_i32_26 = arith.constant 64 : i32
    %78 = tpu.dynamic_rotate %76 by %c64_i32_26 dim 1 : vector<8x128xf32>, i32 -> vector<8x128xf32>
    %c64_i32_27 = arith.constant 64 : i32
    %79 = tpu.dynamic_rotate %77 by %c64_i32_27 dim 1 : vector<8x128xf32>, i32 -> vector<8x128xf32>
    %80 = arith.mulf %76, %78 : vector<8x128xf32>
    %81 = arith.select %21, %77, %79 : vector<8x128xi1>, vector<8x128xf32>
    %82 = arith.select %21, %79, %77 : vector<8x128xi1>, vector<8x128xf32>
    %83 = arith.mulf %81, %63 : vector<8x128xf32>
    %84 = arith.addf %83, %80 : vector<8x128xf32>
    %85 = math.tanh %84 : vector<8x128xf32>
    %86 = arith.mulf %82, %85 : vector<8x128xf32>
    %87 = vector.extract_strided_slice %8 {offsets = [24, 0], sizes = [8, 256], strides = [1, 1]} : vector<64x256xf32> to vector<8x256xf32>
    %88 = arith.truncf %86 : vector<8x128xf32> to vector<8x128xbf16>
    %cst_28 = arith.constant dense<0.000000e+00> : vector<8x256xf32>
    %89 = tpu.matmul %88, %10, %cst_28 {dimension_numbers = #tpu.dot_dimension_numbers<[1], [0], [0], [1], [0, 0, 1, 1], [], []>} : vector<8x128xbf16>, vector<128x256xbf16>, vector<8x256xf32> -> vector<8x256xf32>
    %90 = arith.addf %87, %89 : vector<8x256xf32>
    %91 = math.tanh %90 : vector<8x256xf32>
    %cst_29 = arith.constant 5.000000e-01 : f32
    %92 = vector.broadcast %cst_29 : f32 to vector<8x256xf32>
    %93 = arith.mulf %92, %91 : vector<8x256xf32>
    %cst_30 = arith.constant 5.000000e-01 : f32
    %94 = vector.broadcast %cst_30 : f32 to vector<8x256xf32>
    %95 = arith.addf %93, %94 : vector<8x256xf32>
    %96 = arith.select %18, %91, %95 : vector<8x256xi1>, vector<8x256xf32>
    %97 = vector.extract_strided_slice %96 {offsets = [0, 0], sizes = [8, 128], strides = [1, 1]} : vector<8x256xf32> to vector<8x128xf32>
    %98 = vector.extract_strided_slice %96 {offsets = [0, 128], sizes = [8, 128], strides = [1, 1]} : vector<8x256xf32> to vector<8x128xf32>
    %c64_i32_31 = arith.constant 64 : i32
    %99 = tpu.dynamic_rotate %97 by %c64_i32_31 dim 1 : vector<8x128xf32>, i32 -> vector<8x128xf32>
    %c64_i32_32 = arith.constant 64 : i32
    %100 = tpu.dynamic_rotate %98 by %c64_i32_32 dim 1 : vector<8x128xf32>, i32 -> vector<8x128xf32>
    %101 = arith.mulf %97, %99 : vector<8x128xf32>
    %102 = arith.select %21, %98, %100 : vector<8x128xi1>, vector<8x128xf32>
    %103 = arith.select %21, %100, %98 : vector<8x128xi1>, vector<8x128xf32>
    %104 = arith.mulf %102, %84 : vector<8x128xf32>
    %105 = arith.addf %104, %101 : vector<8x128xf32>
    %106 = math.tanh %105 : vector<8x128xf32>
    %107 = arith.mulf %103, %106 : vector<8x128xf32>
    %108 = vector.extract_strided_slice %8 {offsets = [32, 0], sizes = [8, 256], strides = [1, 1]} : vector<64x256xf32> to vector<8x256xf32>
    %109 = arith.truncf %107 : vector<8x128xf32> to vector<8x128xbf16>
    %cst_33 = arith.constant dense<0.000000e+00> : vector<8x256xf32>
    %110 = tpu.matmul %109, %10, %cst_33 {dimension_numbers = #tpu.dot_dimension_numbers<[1], [0], [0], [1], [0, 0, 1, 1], [], []>} : vector<8x128xbf16>, vector<128x256xbf16>, vector<8x256xf32> -> vector<8x256xf32>
    %111 = arith.addf %108, %110 : vector<8x256xf32>
    %112 = math.tanh %111 : vector<8x256xf32>
    %cst_34 = arith.constant 5.000000e-01 : f32
    %113 = vector.broadcast %cst_34 : f32 to vector<8x256xf32>
    %114 = arith.mulf %113, %112 : vector<8x256xf32>
    %cst_35 = arith.constant 5.000000e-01 : f32
    %115 = vector.broadcast %cst_35 : f32 to vector<8x256xf32>
    %116 = arith.addf %114, %115 : vector<8x256xf32>
    %117 = arith.select %18, %112, %116 : vector<8x256xi1>, vector<8x256xf32>
    %118 = vector.extract_strided_slice %117 {offsets = [0, 0], sizes = [8, 128], strides = [1, 1]} : vector<8x256xf32> to vector<8x128xf32>
    %119 = vector.extract_strided_slice %117 {offsets = [0, 128], sizes = [8, 128], strides = [1, 1]} : vector<8x256xf32> to vector<8x128xf32>
    %c64_i32_36 = arith.constant 64 : i32
    %120 = tpu.dynamic_rotate %118 by %c64_i32_36 dim 1 : vector<8x128xf32>, i32 -> vector<8x128xf32>
    %c64_i32_37 = arith.constant 64 : i32
    %121 = tpu.dynamic_rotate %119 by %c64_i32_37 dim 1 : vector<8x128xf32>, i32 -> vector<8x128xf32>
    %122 = arith.mulf %118, %120 : vector<8x128xf32>
    %123 = arith.select %21, %119, %121 : vector<8x128xi1>, vector<8x128xf32>
    %124 = arith.select %21, %121, %119 : vector<8x128xi1>, vector<8x128xf32>
    %125 = arith.mulf %123, %105 : vector<8x128xf32>
    %126 = arith.addf %125, %122 : vector<8x128xf32>
    %127 = math.tanh %126 : vector<8x128xf32>
    %128 = arith.mulf %124, %127 : vector<8x128xf32>
    %129 = vector.extract_strided_slice %8 {offsets = [40, 0], sizes = [8, 256], strides = [1, 1]} : vector<64x256xf32> to vector<8x256xf32>
    %130 = arith.truncf %128 : vector<8x128xf32> to vector<8x128xbf16>
    %cst_38 = arith.constant dense<0.000000e+00> : vector<8x256xf32>
    %131 = tpu.matmul %130, %10, %cst_38 {dimension_numbers = #tpu.dot_dimension_numbers<[1], [0], [0], [1], [0, 0, 1, 1], [], []>} : vector<8x128xbf16>, vector<128x256xbf16>, vector<8x256xf32> -> vector<8x256xf32>
    %132 = arith.addf %129, %131 : vector<8x256xf32>
    %133 = math.tanh %132 : vector<8x256xf32>
    %cst_39 = arith.constant 5.000000e-01 : f32
    %134 = vector.broadcast %cst_39 : f32 to vector<8x256xf32>
    %135 = arith.mulf %134, %133 : vector<8x256xf32>
    %cst_40 = arith.constant 5.000000e-01 : f32
    %136 = vector.broadcast %cst_40 : f32 to vector<8x256xf32>
    %137 = arith.addf %135, %136 : vector<8x256xf32>
    %138 = arith.select %18, %133, %137 : vector<8x256xi1>, vector<8x256xf32>
    %139 = vector.extract_strided_slice %138 {offsets = [0, 0], sizes = [8, 128], strides = [1, 1]} : vector<8x256xf32> to vector<8x128xf32>
    %140 = vector.extract_strided_slice %138 {offsets = [0, 128], sizes = [8, 128], strides = [1, 1]} : vector<8x256xf32> to vector<8x128xf32>
    %c64_i32_41 = arith.constant 64 : i32
    %141 = tpu.dynamic_rotate %139 by %c64_i32_41 dim 1 : vector<8x128xf32>, i32 -> vector<8x128xf32>
    %c64_i32_42 = arith.constant 64 : i32
    %142 = tpu.dynamic_rotate %140 by %c64_i32_42 dim 1 : vector<8x128xf32>, i32 -> vector<8x128xf32>
    %143 = arith.mulf %139, %141 : vector<8x128xf32>
    %144 = arith.select %21, %140, %142 : vector<8x128xi1>, vector<8x128xf32>
    %145 = arith.select %21, %142, %140 : vector<8x128xi1>, vector<8x128xf32>
    %146 = arith.mulf %144, %126 : vector<8x128xf32>
    %147 = arith.addf %146, %143 : vector<8x128xf32>
    %148 = math.tanh %147 : vector<8x128xf32>
    %149 = arith.mulf %145, %148 : vector<8x128xf32>
    %150 = vector.extract_strided_slice %8 {offsets = [48, 0], sizes = [8, 256], strides = [1, 1]} : vector<64x256xf32> to vector<8x256xf32>
    %151 = arith.truncf %149 : vector<8x128xf32> to vector<8x128xbf16>
    %cst_43 = arith.constant dense<0.000000e+00> : vector<8x256xf32>
    %152 = tpu.matmul %151, %10, %cst_43 {dimension_numbers = #tpu.dot_dimension_numbers<[1], [0], [0], [1], [0, 0, 1, 1], [], []>} : vector<8x128xbf16>, vector<128x256xbf16>, vector<8x256xf32> -> vector<8x256xf32>
    %153 = arith.addf %150, %152 : vector<8x256xf32>
    %154 = math.tanh %153 : vector<8x256xf32>
    %cst_44 = arith.constant 5.000000e-01 : f32
    %155 = vector.broadcast %cst_44 : f32 to vector<8x256xf32>
    %156 = arith.mulf %155, %154 : vector<8x256xf32>
    %cst_45 = arith.constant 5.000000e-01 : f32
    %157 = vector.broadcast %cst_45 : f32 to vector<8x256xf32>
    %158 = arith.addf %156, %157 : vector<8x256xf32>
    %159 = arith.select %18, %154, %158 : vector<8x256xi1>, vector<8x256xf32>
    %160 = vector.extract_strided_slice %159 {offsets = [0, 0], sizes = [8, 128], strides = [1, 1]} : vector<8x256xf32> to vector<8x128xf32>
    %161 = vector.extract_strided_slice %159 {offsets = [0, 128], sizes = [8, 128], strides = [1, 1]} : vector<8x256xf32> to vector<8x128xf32>
    %c64_i32_46 = arith.constant 64 : i32
    %162 = tpu.dynamic_rotate %160 by %c64_i32_46 dim 1 : vector<8x128xf32>, i32 -> vector<8x128xf32>
    %c64_i32_47 = arith.constant 64 : i32
    %163 = tpu.dynamic_rotate %161 by %c64_i32_47 dim 1 : vector<8x128xf32>, i32 -> vector<8x128xf32>
    %164 = arith.mulf %160, %162 : vector<8x128xf32>
    %165 = arith.select %21, %161, %163 : vector<8x128xi1>, vector<8x128xf32>
    %166 = arith.select %21, %163, %161 : vector<8x128xi1>, vector<8x128xf32>
    %167 = arith.mulf %165, %147 : vector<8x128xf32>
    %168 = arith.addf %167, %164 : vector<8x128xf32>
    %169 = math.tanh %168 : vector<8x128xf32>
    %170 = arith.mulf %166, %169 : vector<8x128xf32>
    %171 = vector.extract_strided_slice %8 {offsets = [56, 0], sizes = [8, 256], strides = [1, 1]} : vector<64x256xf32> to vector<8x256xf32>
    %172 = arith.truncf %170 : vector<8x128xf32> to vector<8x128xbf16>
    %cst_48 = arith.constant dense<0.000000e+00> : vector<8x256xf32>
    %173 = tpu.matmul %172, %10, %cst_48 {dimension_numbers = #tpu.dot_dimension_numbers<[1], [0], [0], [1], [0, 0, 1, 1], [], []>} : vector<8x128xbf16>, vector<128x256xbf16>, vector<8x256xf32> -> vector<8x256xf32>
    %174 = arith.addf %171, %173 : vector<8x256xf32>
    %175 = math.tanh %174 : vector<8x256xf32>
    %cst_49 = arith.constant 5.000000e-01 : f32
    %176 = vector.broadcast %cst_49 : f32 to vector<8x256xf32>
    %177 = arith.mulf %176, %175 : vector<8x256xf32>
    %cst_50 = arith.constant 5.000000e-01 : f32
    %178 = vector.broadcast %cst_50 : f32 to vector<8x256xf32>
    %179 = arith.addf %177, %178 : vector<8x256xf32>
    %180 = arith.select %18, %175, %179 : vector<8x256xi1>, vector<8x256xf32>
    %181 = vector.extract_strided_slice %180 {offsets = [0, 0], sizes = [8, 128], strides = [1, 1]} : vector<8x256xf32> to vector<8x128xf32>
    %182 = vector.extract_strided_slice %180 {offsets = [0, 128], sizes = [8, 128], strides = [1, 1]} : vector<8x256xf32> to vector<8x128xf32>
    %c64_i32_51 = arith.constant 64 : i32
    %183 = tpu.dynamic_rotate %181 by %c64_i32_51 dim 1 : vector<8x128xf32>, i32 -> vector<8x128xf32>
    %c64_i32_52 = arith.constant 64 : i32
    %184 = tpu.dynamic_rotate %182 by %c64_i32_52 dim 1 : vector<8x128xf32>, i32 -> vector<8x128xf32>
    %185 = arith.mulf %181, %183 : vector<8x128xf32>
    %186 = arith.select %21, %182, %184 : vector<8x128xi1>, vector<8x128xf32>
    %187 = arith.select %21, %184, %182 : vector<8x128xi1>, vector<8x128xf32>
    %188 = arith.mulf %186, %168 : vector<8x128xf32>
    %189 = arith.addf %188, %185 : vector<8x128xf32>
    %190 = math.tanh %189 : vector<8x128xf32>
    %191 = arith.mulf %187, %190 : vector<8x128xf32>
    %192 = arith.truncf %191 : vector<8x128xf32> to vector<8x128xbf16>
    %cst_53 = arith.constant dense<0.000000e+00> : vector<8x128xf32>
    %193 = tpu.matmul %192, %12, %cst_53 {dimension_numbers = #tpu.dot_dimension_numbers<[1], [0], [0], [1], [0, 0, 1, 1], [], []>} : vector<8x128xbf16>, vector<128x128xbf16>, vector<8x128xf32> -> vector<8x128xf32>
    %c0_54 = arith.constant 0 : index
    %c0_55 = arith.constant 0 : index
    %194 = vector.load %arg6[%c0_54, %c0_55] : memref<1x128xf32, #tpu.memory_space<vmem>>, vector<1x128xf32>
    %195 = vector.broadcast %194 : vector<1x128xf32> to vector<8x128xf32>
    %196 = arith.addf %193, %195 : vector<8x128xf32>
    %c0_56 = arith.constant 0 : index
    %c0_57 = arith.constant 0 : index
    %197 = vector.load %arg7[%c0_56, %c0_57] : memref<8x128xf32, #tpu.memory_space<vmem>>, vector<8x128xf32>
    tpu.vector_store %arg7[%c0_56, %c0_57], %196 {strides = array<i32>} : memref<8x128xf32, #tpu.memory_space<vmem>>, vector<8x128xf32>,
    return
  }
  func.func @transform_0(%arg0: i32) -> (i32, i32, i32) {
    %c0_i32 = arith.constant 0 : i32
    %c0_i32_0 = arith.constant 0 : i32
    %c0_i32_1 = arith.constant 0 : i32
    return %c0_i32, %arg0, %c0_i32_0 : i32, i32, i32
  }
  func.func @transform_1(%arg0: i32) -> (i32, i32) {
    %c0_i32 = arith.constant 0 : i32
    %c0_i32_0 = arith.constant 0 : i32
    %c0_i32_1 = arith.constant 0 : i32
    return %c0_i32, %c0_i32_0 : i32, i32
  }
  func.func @transform_2(%arg0: i32) -> (i32, i32) {
    %c0_i32 = arith.constant 0 : i32
    %c0_i32_0 = arith.constant 0 : i32
    %c0_i32_1 = arith.constant 0 : i32
    return %c0_i32, %c0_i32_0 : i32, i32
  }
  func.func @transform_3(%arg0: i32) -> (i32, i32) {
    %c0_i32 = arith.constant 0 : i32
    %c0_i32_0 = arith.constant 0 : i32
    %c0_i32_1 = arith.constant 0 : i32
    return %c0_i32, %c0_i32_0 : i32, i32
  }
  func.func @transform_4(%arg0: i32) -> (i32, i32) {
    %c0_i32 = arith.constant 0 : i32
    %c0_i32_0 = arith.constant 0 : i32
    %c0_i32_1 = arith.constant 0 : i32
    return %c0_i32, %c0_i32_0 : i32, i32
  }
  func.func @transform_5(%arg0: i32) -> (i32, i32) {
    %c0_i32 = arith.constant 0 : i32
    %c0_i32_0 = arith.constant 0 : i32
    %c0_i32_1 = arith.constant 0 : i32
    return %c0_i32, %c0_i32_0 : i32, i32
  }
  func.func @transform_6(%arg0: i32) -> (i32, i32) {
    %c0_i32 = arith.constant 0 : i32
    %c0_i32_0 = arith.constant 0 : i32
    return %arg0, %c0_i32 : i32, i32
  }
}

</mosaic_0001>

<llo_original>
// kernel: tpu_custom_call.1
$region0: #{tpu_custom_call.1}
  #allocation0 [shape = 'u32[]', space=smem, size = 0x4, offset = 0x4, fixed_abs, tag = 'smem constant byte address 0x4 - core index']
  #allocation1 [shape = 'u32[72,128]{1,0:T(1,128)}', space=vmem, size = 0x9000, scoped, tag = 'internal scratch']
  %s0 = inlined_call_operand.hbm [shape: f32[8,8,28], index: 0, kind: input, shape index: {}]
  %s1 = inlined_call_operand.hbm [shape: f32[28,256], index: 1, kind: input, shape index: {}]
  %s2 = inlined_call_operand.hbm [shape: f32[128,256], index: 2, kind: input, shape index: {}]
  %s3 = inlined_call_operand.vmem [shape: f32[1,256], index: 3, kind: input, shape index: {}]
  %s4 = inlined_call_operand.hbm [shape: f32[128,128], index: 4, kind: input, shape index: {}]
  %s5 = inlined_call_operand.vmem [shape: f32[1,128], index: 5, kind: input, shape index: {}]
  %s6 = inlined_call_operand.hbm [shape: f32[8,128], index: 6, kind: output, shape index: {}]
  %s7 = sld [smem:[#allocation0]]
  $region50: #{tpu_custom_call.1} parent=0
    _
  %s9 = ssub.s32 1, %s7
  %s10 = scalar_select 0, %s9, %s7
  $region1: #{tpu_custom_call.1} parent=0
    #allocation2 [shape = 'u8[32768]{0}', space=vmem, size = 0x8000, scoped, tag = 'input window, operand 0, single buffered']
    #allocation3 [shape = 's32[1]{0}', space=sflag, size = 0x4, scoped, tag = 'scoped memory for tpu_custom_call.1']
    #allocation4 [shape = 's32[1]{0}', space=sflag, size = 0x4, scoped, tag = 'scoped memory for tpu_custom_call.1']
    #allocation5 [shape = 'u8[32768]{0}', space=vmem, size = 0x8000, scoped, tag = 'input window, operand 1, single buffered']
    #allocation6 [shape = 's32[1]{0}', space=sflag, size = 0x4, scoped, tag = 'scoped memory for tpu_custom_call.1']
    #allocation7 [shape = 'u8[131072]{0}', space=vmem, size = 0x20000, scoped, tag = 'input window, operand 2, single buffered']
    #allocation8 [shape = 'u8[65536]{0}', space=vmem, size = 0x10000, scoped, tag = 'input window, operand 4, single buffered']
    #allocation9 [shape = 's32[1]{0}', space=sflag, size = 0x4, scoped, tag = 'scoped memory for tpu_custom_call.1']
    #allocation10 [shape = 'u8[4096]{0}', space=vmem, size = 0x1000, scoped, tag = 'output window, operand 0, single buffered']
    %11 = vsyncpa [#allocation3], 0
    %12 = vsyncpa [#allocation6], 0
    %13 = vsyncpa [#allocation9], 0
    %14 = vsyncpa [#allocation4], 0
    // Predicated region
    $region2: #{tpu_custom_call.1} parent=1 // pred_check
      _
    $region3: #{tpu_custom_call.1} parent=1 // pred_check_branch
      %16 = sbr.rel (0) target = $region5
    $region4: #{tpu_custom_call.1} parent=1 // pred_region
      %18 = vsyncadd [#allocation3], 0
      %s19 = sshll.u32 %s0, 4
      %s20 = int_to_ptr.hbm [resolvable:$true] %s19
      %s21 = sshll.u32 [#allocation2], 4
      %s22 = int_to_ptr.vmem [resolvable:$true] %s21
      %27 = dma.hbm_to_vmem [thread:$0]  %s20, 1024, %s22, [#allocation3], 128, 128, 8
    $region5: #{tpu_custom_call.1} parent=1 // pred_fallthru
      _
    // Predicated region
    $region6: #{tpu_custom_call.1} parent=1 // pred_check
      _
    $region7: #{tpu_custom_call.1} parent=1 // pred_check_branch
      %29 = sbr.rel (0) target = $region9
    $region8: #{tpu_custom_call.1} parent=1 // pred_region
      %31 = vsyncadd [#allocation6], 0
      %s32 = sshll.u32 %s1, 4
      %s33 = int_to_ptr.hbm [resolvable:$true] %s32
      %s34 = sshll.u32 [#allocation5], 4
      %s35 = int_to_ptr.vmem [resolvable:$true] %s34
      %40 = dma.hbm_to_vmem [thread:$0]  %s33, 1024, %s35, [#allocation6], 256, 256, 16
    $region9: #{tpu_custom_call.1} parent=1 // pred_fallthru
      _
    // Predicated region
    $region10: #{tpu_custom_call.1} parent=1 // pred_check
      _
    $region11: #{tpu_custom_call.1} parent=1 // pred_check_branch
      %42 = sbr.rel (0) target = $region13
    $region12: #{tpu_custom_call.1} parent=1 // pred_region
      %44 = vsyncadd [#allocation6], 0
      %s45 = sshll.u32 %s2, 4
      %s46 = int_to_ptr.hbm [resolvable:$true] %s45
      %s47 = sshll.u32 [#allocation7], 4
      %s48 = int_to_ptr.vmem [resolvable:$true] %s47
      %53 = dma.hbm_to_vmem [thread:$0]  %s46, 4096, %s48, [#allocation6], 256, 256, 16
    $region13: #{tpu_custom_call.1} parent=1 // pred_fallthru
      _
    // Predicated region
    $region14: #{tpu_custom_call.1} parent=1 // pred_check
      _
    $region15: #{tpu_custom_call.1} parent=1 // pred_check_branch
      %55 = sbr.rel (0) target = $region17
    $region16: #{tpu_custom_call.1} parent=1 // pred_region
      _
    $region17: #{tpu_custom_call.1} parent=1 // pred_fallthru
      _
    // Predicated region
    $region18: #{tpu_custom_call.1} parent=1 // pred_check
      _
    $region19: #{tpu_custom_call.1} parent=1 // pred_check_branch
      %57 = sbr.rel (0) target = $region21
    $region20: #{tpu_custom_call.1} parent=1 // pred_region
      %59 = vsyncadd [#allocation9], 0
      %s60 = sshll.u32 %s4, 4
      %s61 = int_to_ptr.hbm [resolvable:$true] %s60
      %s62 = sshll.u32 [#allocation8], 4
      %s63 = int_to_ptr.vmem [resolvable:$true] %s62
      %68 = dma.hbm_to_vmem [thread:$0]  %s61, 2048, %s63, [#allocation9], 128, 128, 8
    $region21: #{tpu_custom_call.1} parent=1 // pred_fallthru
      _
    // Predicated region
    $region22: #{tpu_custom_call.1} parent=1 // pred_check
      _
    $region23: #{tpu_custom_call.1} parent=1 // pred_check_branch
      %70 = sbr.rel (0) target = $region25
    $region24: #{tpu_custom_call.1} parent=1 // pred_region
      _
    $region25: #{tpu_custom_call.1} parent=1 // pred_fallthru
      _
    // Predicated region
    $region26: #{tpu_custom_call.1} parent=1 // pred_check
      _
    $region27: #{tpu_custom_call.1} parent=1 // pred_check_branch
      %72 = sbr.rel (0) target = $region29
    $region28: #{tpu_custom_call.1} parent=1 // pred_region
      %74 = dma.done [#allocation3], 1024
    $region29: #{tpu_custom_call.1} parent=1 // pred_fallthru
      _
    // Predicated region
    $region30: #{tpu_custom_call.1} parent=1 // pred_check
      _
    $region31: #{tpu_custom_call.1} parent=1 // pred_check_branch
      %76 = sbr.rel (0) target = $region33
    $region32: #{tpu_custom_call.1} parent=1 // pred_region
      %78 = dma.done [#allocation6], 1024
    $region33: #{tpu_custom_call.1} parent=1 // pred_fallthru
      _
    // Predicated region
    $region34: #{tpu_custom_call.1} parent=1 // pred_check
      _
    $region35: #{tpu_custom_call.1} parent=1 // pred_check_branch
      %80 = sbr.rel (0) target = $region37
    $region36: #{tpu_custom_call.1} parent=1 // pred_region
      %82 = dma.done [#allocation6], 4096
    $region37: #{tpu_custom_call.1} parent=1 // pred_fallthru
      _
    // Predicated region
    $region38: #{tpu_custom_call.1} parent=1 // pred_check
      _
    $region39: #{tpu_custom_call.1} parent=1 // pred_check_branch
      %84 = sbr.rel (0) target = $region41
    $region40: #{tpu_custom_call.1} parent=1 // pred_region
      %86 = dma.done [#allocation9], 2048
    $region41: #{tpu_custom_call.1} parent=1 // pred_fallthru
      _
    %v88 = vld [vmem:[#allocation2] sm:$0xff]
    %v89 = vld [vmem:[#allocation2 + $0x8] sm:$0xff]
    %v90 = vld [vmem:[#allocation2 + $0x10] sm:$0xff]
    %v91 = vld [vmem:[#allocation2 + $0x18] sm:$0xff]
    %v92 = vld [vmem:[#allocation2 + $0x20] sm:$0xff]
    %v93 = vld [vmem:[#allocation2 + $0x28] sm:$0xff]
    %v94 = vld [vmem:[#allocation2 + $0x30] sm:$0xff]
    %v95 = vld [vmem:[#allocation2 + $0x38] sm:$0xff]
    %v96 = vpack.c.bf16 %v89, %v88
    %v97 = vpack.c.bf16 %v91, %v90
    %v98 = vpack.c.bf16 %v93, %v92
    %v99 = vpack.c.bf16 %v95, %v94
    %v100 = vld [vmem:[#allocation5] sm:$0xff]
    %v101 = vld [vmem:[#allocation5 + $0x8] sm:$0xff]
    %v102 = vld [vmem:[#allocation5 + $0x10] sm:$0xff]
    %v103 = vld [vmem:[#allocation5 + $0x18] sm:$0xff]
    %v104 = vld [vmem:[#allocation5 + $0x20] sm:$0xff]
    %v105 = vld [vmem:[#allocation5 + $0x28] sm:$0xff]
    %v106 = vld [vmem:[#allocation5 + $0x30] sm:$0xf]
    %v107 = vld [vmem:[#allocation5 + $0x38] sm:$0xf]
    %v108 = vpack.c.bf16 %v102, %v100
    %v109 = vpack.c.bf16 %v103, %v101
    %v110 = vpack.c.bf16 %v106, %v104
    %v111 = vpack.c.bf16 %v107, %v105
    %v112 = vld [vmem:[%s3] sm:$0x3]
    %v114 = vperm.slane %v112, 0
    %v115 = vperm.slane %v112, 1
    %vm118 = vcmask 228352
    %v120 = vsel %vm118, %v96, 0
    %v123 = vsel %vm118, %v97, 0
    %v126 = vsel %vm118, %v98, 0
    %v129 = vsel %vm118, %v99, 0
    %vm131 = vcmask 1045504
    %v133 = vsel %vm131, %v110, 0
    %v136 = vsel %vm131, %v111, 0
    %138 = vmatpush.bf16.msra.mxu0 0
    %139 = vmatpush.bf16.msra.mxu0 0
    %140 = vmatpush.bf16.msra.mxu0 0
    %141 = vmatpush.bf16.msra.mxu0 0
    %142 = vmatpush.bf16.msra.mxu0 0
    %143 = vmatpush.bf16.msra.mxu0 0
    %144 = vmatpush.bf16.msra.mxu0 %v133
    %145 = vmatpush.bf16.msra.mxu0 %v108
    %146 = vmatmul.bf16.gmra.mxu0 %v120
    %v147 = vpop.f32.mrf.mxu0
    %v148 = vadd.f32 %v114, %v147
    %v149 = vpop.f32.mrf.mxu0
    %v150 = vadd.f32 %v114, %v149
    %151 = vmatmul.bf16.gmra.mxu0 %v123
    %v152 = vpop.f32.mrf.mxu0
    %v153 = vadd.f32 %v114, %v152
    %v154 = vpop.f32.mrf.mxu0
    %v155 = vadd.f32 %v114, %v154
    %156 = vmatmul.bf16.gmra.mxu0 %v126
    %v157 = vpop.f32.mrf.mxu0
    %v158 = vadd.f32 %v114, %v157
    %v159 = vpop.f32.mrf.mxu0
    %v160 = vadd.f32 %v114, %v159
    %161 = vmatmul.bf16.gmra.mxu0 %v129
    %v162 = vpop.f32.mrf.mxu0
    %v163 = vadd.f32 %v114, %v162
    %v164 = vpop.f32.mrf.mxu0
    %v165 = vadd.f32 %v114, %v164
    %166 = vdwg.mxu0
    %167 = vmatpush.bf16.msra.mxu0 0
    %168 = vmatpush.bf16.msra.mxu0 0
    %169 = vmatpush.bf16.msra.mxu0 0
    %170 = vmatpush.bf16.msra.mxu0 0
    %171 = vmatpush.bf16.msra.mxu0 0
    %172 = vmatpush.bf16.msra.mxu0 0
    %173 = vmatpush.bf16.msra.mxu0 %v136
    %174 = vmatpush.bf16.msra.mxu0 %v109
    %175 = vmatmul.bf16.gmra.mxu0 %v120
    %v176 = vpop.f32.mrf.mxu0
    %v177 = vadd.f32 %v115, %v176
    %v178 = vpop.f32.mrf.mxu0
    %v179 = vadd.f32 %v115, %v178
    %180 = vmatmul.bf16.gmra.mxu0 %v123
    %v181 = vpop.f32.mrf.mxu0
    %v182 = vadd.f32 %v115, %v181
    %v183 = vpop.f32.mrf.mxu0
    %v184 = vadd.f32 %v115, %v183
    %185 = vmatmul.bf16.gmra.mxu0 %v126
    %v186 = vpop.f32.mrf.mxu0
    %v187 = vadd.f32 %v115, %v186
    %v188 = vpop.f32.mrf.mxu0
    %v189 = vadd.f32 %v115, %v188
    %190 = vmatmul.bf16.gmra.mxu0 %v129
    %v191 = vpop.f32.mrf.mxu0
    %v192 = vadd.f32 %v115, %v191
    %v193 = vpop.f32.mrf.mxu0
    %v194 = vadd.f32 %v115, %v193
    %195 = vdwg.mxu0
    %v196 = vld [vmem:[#allocation7] sm:$0xff]
    %v197 = vld [vmem:[#allocation7 + $0x8] sm:$0xff]
    %v198 = vld [vmem:[#allocation7 + $0x10] sm:$0xff]
    %v199 = vld [vmem:[#allocation7 + $0x18] sm:$0xff]
    %v200 = vld [vmem:[#allocation7 + $0x20] sm:$0xff]
    %v201 = vld [vmem:[#allocation7 + $0x28] sm:$0xff]
    %v202 = vld [vmem:[#allocation7 + $0x30] sm:$0xff]
    %v203 = vld [vmem:[#allocation7 + $0x38] sm:$0xff]
    %v204 = vld [vmem:[#allocation7 + $0x40] sm:$0xff]
    %v205 = vld [vmem:[#allocation7 + $0x48] sm:$0xff]
    %v206 = vld [vmem:[#allocation7 + $0x50] sm:$0xff]
    %v207 = vld [vmem:[#allocation7 + $0x58] sm:$0xff]
    %v208 = vld [vmem:[#allocation7 + $0x60] sm:$0xff]
    %v209 = vld [vmem:[#allocation7 + $0x68] sm:$0xff]
    %v210 = vld [vmem:[#allocation7 + $0x70] sm:$0xff]
    %v211 = vld [vmem:[#allocation7 + $0x78] sm:$0xff]
    %v212 = vld [vmem:[#allocation7 + $0x80] sm:$0xff]
    %v213 = vld [vmem:[#allocation7 + $0x88] sm:$0xff]
    %v214 = vld [vmem:[#allocation7 + $0x90] sm:$0xff]
    %v215 = vld [vmem:[#allocation7 + $0x98] sm:$0xff]
    %v216 = vld [vmem:[#allocation7 + $0xa0] sm:$0xff]
    %v217 = vld [vmem:[#allocation7 + $0xa8] sm:$0xff]
    %v218 = vld [vmem:[#allocation7 + $0xb0] sm:$0xff]
    %v219 = vld [vmem:[#allocation7 + $0xb8] sm:$0xff]
    %v220 = vld [vmem:[#allocation7 + $0xc0] sm:$0xff]
    %v221 = vld [vmem:[#allocation7 + $0xc8] sm:$0xff]
    %v222 = vld [vmem:[#allocation7 + $0xd0] sm:$0xff]
    %v223 = vld [vmem:[#allocation7 + $0xd8] sm:$0xff]
    %v224 = vld [vmem:[#allocation7 + $0xe0] sm:$0xff]
    %v225 = vld [vmem:[#allocation7 + $0xe8] sm:$0xff]
    %v226 = vld [vmem:[#allocation7 + $0xf0] sm:$0xff]
    %v227 = vld [vmem:[#allocation7 + $0xf8] sm:$0xff]
    %v228 = vpack.c.bf16 %v198, %v196
    %v229 = vpack.c.bf16 %v199, %v197
    %v230 = vpack.c.bf16 %v202, %v200
    %v231 = vpack.c.bf16 %v203, %v201
    %v232 = vpack.c.bf16 %v206, %v204
    %v233 = vpack.c.bf16 %v207, %v205
    %v234 = vpack.c.bf16 %v210, %v208
    %v235 = vpack.c.bf16 %v211, %v209
    %v236 = vpack.c.bf16 %v214, %v212
    %v237 = vpack.c.bf16 %v215, %v213
    %v238 = vpack.c.bf16 %v218, %v216
    %v239 = vpack.c.bf16 %v219, %v217
    %v240 = vpack.c.bf16 %v222, %v220
    %v241 = vpack.c.bf16 %v223, %v221
    %v242 = vpack.c.bf16 %v226, %v224
    %v243 = vpack.c.bf16 %v227, %v225
    %v244 = vld [vmem:[#allocation8] sm:$0xff]
    %v245 = vld [vmem:[#allocation8 + $0x8] sm:$0xff]
    %v246 = vld [vmem:[#allocation8 + $0x10] sm:$0xff]
    %v247 = vld [vmem:[#allocation8 + $0x18] sm:$0xff]
    %v248 = vld [vmem:[#allocation8 + $0x20] sm:$0xff]
    %v249 = vld [vmem:[#allocation8 + $0x28] sm:$0xff]
    %v250 = vld [vmem:[#allocation8 + $0x30] sm:$0xff]
    %v251 = vld [vmem:[#allocation8 + $0x38] sm:$0xff]
    %v252 = vld [vmem:[#allocation8 + $0x40] sm:$0xff]
    %v253 = vld [vmem:[#allocation8 + $0x48] sm:$0xff]
    %v254 = vld [vmem:[#allocation8 + $0x50] sm:$0xff]
    %v255 = vld [vmem:[#allocation8 + $0x58] sm:$0xff]
    %v256 = vld [vmem:[#allocation8 + $0x60] sm:$0xff]
    %v257 = vld [vmem:[#allocation8 + $0x68] sm:$0xff]
    %v258 = vld [vmem:[#allocation8 + $0x70] sm:$0xff]
    %v259 = vld [vmem:[#allocation8 + $0x78] sm:$0xff]
    %v260 = vpack.c.bf16 %v245, %v244
    %v261 = vpack.c.bf16 %v247, %v246
    %v262 = vpack.c.bf16 %v249, %v248
    %v263 = vpack.c.bf16 %v251, %v250
    %v264 = vpack.c.bf16 %v253, %v252
    %v265 = vpack.c.bf16 %v255, %v254
    %v266 = vpack.c.bf16 %v257, %v256
    %v267 = vpack.c.bf16 %v259, %v258
    %v268 = vlaneseq
    %v269 = vand.u32 %v268, 127
    %v270 = vadd.s32 %v269, 128
    %vm271 = vcmp.ge.s32.totalorder %v269, 64
    %vm272 = vcmp.ge.s32.totalorder %v270, 64
    %vm273 = vcmp.lt.s32.totalorder %v269, 128
    %vm274 = vcmp.lt.s32.totalorder %v270, 128
    %vm275 = vmand %vm271, %vm273
    %vm276 = vmand %vm272, %vm274
    %vm277 = vcmp.lt.s32.totalorder %v269, 64
    %278 = vmatpush.bf16.msra.mxu0 %v242
    %279 = vmatpush.bf16.msra.mxu0 %v240
    %280 = vmatpush.bf16.msra.mxu0 %v238
    %281 = vmatpush.bf16.msra.mxu0 %v236
    %282 = vmatpush.bf16.msra.mxu0 %v234
    %283 = vmatpush.bf16.msra.mxu0 %v232
    %284 = vmatpush.bf16.msra.mxu0 %v230
    %285 = vmatpush.bf16.msra.mxu0 %v228
    %286 = vmatmul.bf16.gmra.mxu0 0
    %v287 = vpop.f32.mrf.mxu0
    %v288 = vadd.f32 0.0, %v287
    %v289 = vpop.f32.mrf.mxu0
    %290 = vdwg.mxu0
    %291 = vmatpush.bf16.msra.mxu0 %v243
    %292 = vmatpush.bf16.msra.mxu0 %v241
    %293 = vmatpush.bf16.msra.mxu0 %v239
    %294 = vmatpush.bf16.msra.mxu0 %v237
    %295 = vmatpush.bf16.msra.mxu0 %v235
    %296 = vmatpush.bf16.msra.mxu0 %v233
    %297 = vmatpush.bf16.msra.mxu0 %v231
    %298 = vmatpush.bf16.msra.mxu0 %v229
    %299 = vmatmul.bf16.gmra.mxu0 0
    %v300 = vpop.f32.mrf.mxu0
    %v301 = vadd.f32 0.0, %v300
    %v302 = vpop.f32.mrf.mxu0
    %303 = vdwg.mxu0
    %v304 = vadd.f32 %v148, %v288
    %v305 = vadd.f32 %v177, %v301
    %v306 = vtanh.pop %v304
    %v307 = vtanh.pop %v305
    %v308 = vmul.f32 %v306, 0.5
    %v309 = vmul.f32 %v307, 0.5
    %v310 = vadd.f32 %v308, 0.5
    %v311 = vadd.f32 %v309, 0.5
    %v312 = vsel %vm275, %v306, %v310
    %v313 = vsel %vm276, %v307, %v311
    %314 = vrot.lane.b32.xlu0 %v312, 64
    %v315 = vpop.permute.xlu0 %314
    %316 = vrot.lane.b32.xlu0 %v313, 64
    %v317 = vpop.permute.xlu0 %316
    %v318 = vmul.f32 %v312, %v315
    %v319 = vsel %vm277, %v313, %v317
    %v320 = vsel %vm277, %v317, %v313
    %v321 = vmul.f32 %v319, 0.0
    %v322 = vadd.f32 %v321, %v318
    %v323 = vtanh.pop %v322
    %v324 = vmul.f32 %v320, %v323
    %v325 = vpack.c.bf16 %v324, %v324
    %326 = vmatpush.bf16.msra.mxu0 %v242
    %327 = vmatpush.bf16.msra.mxu0 %v240
    %328 = vmatpush.bf16.msra.mxu0 %v238
    %329 = vmatpush.bf16.msra.mxu0 %v236
    %330 = vmatpush.bf16.msra.mxu0 %v234
    %331 = vmatpush.bf16.msra.mxu0 %v232
    %332 = vmatpush.bf16.msra.mxu0 %v230
    %333 = vmatpush.bf16.msra.mxu0 %v228
    %334 = vmatmul.bf16.gmra.mxu0 %v325
    %v335 = vpop.f32.mrf.mxu0
    %v336 = vadd.f32 0.0, %v335
    %v337 = vpop.f32.mrf.mxu0
    %338 = vdwg.mxu0
    %339 = vmatpush.bf16.msra.mxu0 %v243
    %340 = vmatpush.bf16.msra.mxu0 %v241
    %341 = vmatpush.bf16.msra.mxu0 %v239
    %342 = vmatpush.bf16.msra.mxu0 %v237
    %343 = vmatpush.bf16.msra.mxu0 %v235
    %344 = vmatpush.bf16.msra.mxu0 %v233
    %345 = vmatpush.bf16.msra.mxu0 %v231
    %346 = vmatpush.bf16.msra.mxu0 %v229
    %347 = vmatmul.bf16.gmra.mxu0 %v325
    %v348 = vpop.f32.mrf.mxu0
    %v349 = vadd.f32 0.0, %v348
    %v350 = vpop.f32.mrf.mxu0
    %351 = vdwg.mxu0
    %v352 = vadd.f32 %v150, %v336
    %v353 = vadd.f32 %v179, %v349
    %v354 = vtanh.pop %v352
    %v355 = vtanh.pop %v353
    %v356 = vmul.f32 %v354, 0.5
    %v357 = vmul.f32 %v355, 0.5
    %v358 = vadd.f32 %v356, 0.5
    %v359 = vadd.f32 %v357, 0.5
    %v360 = vsel %vm275, %v354, %v358
    %v361 = vsel %vm276, %v355, %v359
    %362 = vrot.lane.b32.xlu0 %v360, 64
    %v363 = vpop.permute.xlu0 %362
    %364 = vrot.lane.b32.xlu0 %v361, 64
    %v365 = vpop.permute.xlu0 %364
    %v366 = vmul.f32 %v360, %v363
    %v367 = vsel %vm277, %v361, %v365
    %v368 = vsel %vm277, %v365, %v361
    %v369 = vmul.f32 %v367, %v322
    %v370 = vadd.f32 %v369, %v366
    %v371 = vtanh.pop %v370
    %v372 = vmul.f32 %v368, %v371
    %v373 = vpack.c.bf16 %v372, %v372
    %374 = vmatpush.bf16.msra.mxu0 %v242
    %375 = vmatpush.bf16.msra.mxu0 %v240
    %376 = vmatpush.bf16.msra.mxu0 %v238
    %377 = vmatpush.bf16.msra.mxu0 %v236
    %378 = vmatpush.bf16.msra.mxu0 %v234
    %379 = vmatpush.bf16.msra.mxu0 %v232
    %380 = vmatpush.bf16.msra.mxu0 %v230
    %381 = vmatpush.bf16.msra.mxu0 %v228
    %382 = vmatmul.bf16.gmra.mxu0 %v373
    %v383 = vpop.f32.mrf.mxu0
    %v384 = vadd.f32 0.0, %v383
    %v385 = vpop.f32.mrf.mxu0
    %386 = vdwg.mxu0
    %387 = vmatpush.bf16.msra.mxu0 %v243
    %388 = vmatpush.bf16.msra.mxu0 %v241
    %389 = vmatpush.bf16.msra.mxu0 %v239
    %390 = vmatpush.bf16.msra.mxu0 %v237
    %391 = vmatpush.bf16.msra.mxu0 %v235
    %392 = vmatpush.bf16.msra.mxu0 %v233
    %393 = vmatpush.bf16.msra.mxu0 %v231
    %394 = vmatpush.bf16.msra.mxu0 %v229
    %395 = vmatmul.bf16.gmra.mxu0 %v373
    %v396 = vpop.f32.mrf.mxu0
    %v397 = vadd.f32 0.0, %v396
    %v398 = vpop.f32.mrf.mxu0
    %399 = vdwg.mxu0
    %v400 = vadd.f32 %v153, %v384
    %v401 = vadd.f32 %v182, %v397
    %v402 = vtanh.pop %v400
    %v403 = vtanh.pop %v401
    %v404 = vmul.f32 %v402, 0.5
    %v405 = vmul.f32 %v403, 0.5
    %v406 = vadd.f32 %v404, 0.5
    %v407 = vadd.f32 %v405, 0.5
    %v408 = vsel %vm275, %v402, %v406
    %v409 = vsel %vm276, %v403, %v407
    %410 = vrot.lane.b32.xlu0 %v408, 64
    %v411 = vpop.permute.xlu0 %410
    %412 = vrot.lane.b32.xlu0 %v409, 64
    %v413 = vpop.permute.xlu0 %412
    %v414 = vmul.f32 %v408, %v411
    %v415 = vsel %vm277, %v409, %v413
    %v416 = vsel %vm277, %v413, %v409
    %v417 = vmul.f32 %v415, %v370
    %v418 = vadd.f32 %v417, %v414
    %v419 = vtanh.pop %v418
    %v420 = vmul.f32 %v416, %v419
    %v421 = vpack.c.bf16 %v420, %v420
    %422 = vmatpush.bf16.msra.mxu0 %v242
    %423 = vmatpush.bf16.msra.mxu0 %v240
    %424 = vmatpush.bf16.msra.mxu0 %v238
    %425 = vmatpush.bf16.msra.mxu0 %v236
    %426 = vmatpush.bf16.msra.mxu0 %v234
    %427 = vmatpush.bf16.msra.mxu0 %v232
    %428 = vmatpush.bf16.msra.mxu0 %v230
    %429 = vmatpush.bf16.msra.mxu0 %v228
    %430 = vmatmul.bf16.gmra.mxu0 %v421
    %v431 = vpop.f32.mrf.mxu0
    %v432 = vadd.f32 0.0, %v431
    %v433 = vpop.f32.mrf.mxu0
    %434 = vdwg.mxu0
    %435 = vmatpush.bf16.msra.mxu0 %v243
    %436 = vmatpush.bf16.msra.mxu0 %v241
    %437 = vmatpush.bf16.msra.mxu0 %v239
    %438 = vmatpush.bf16.msra.mxu0 %v237
    %439 = vmatpush.bf16.msra.mxu0 %v235
    %440 = vmatpush.bf16.msra.mxu0 %v233
    %441 = vmatpush.bf16.msra.mxu0 %v231
    %442 = vmatpush.bf16.msra.mxu0 %v229
    %443 = vmatmul.bf16.gmra.mxu0 %v421
    %v444 = vpop.f32.mrf.mxu0
    %v445 = vadd.f32 0.0, %v444
    %v446 = vpop.f32.mrf.mxu0
    %447 = vdwg.mxu0
    %v448 = vadd.f32 %v155, %v432
    %v449 = vadd.f32 %v184, %v445
    %v450 = vtanh.pop %v448
    %v451 = vtanh.pop %v449
    %v452 = vmul.f32 %v450, 0.5
    %v453 = vmul.f32 %v451, 0.5
    %v454 = vadd.f32 %v452, 0.5
    %v455 = vadd.f32 %v453, 0.5
    %v456 = vsel %vm275, %v450, %v454
    %v457 = vsel %vm276, %v451, %v455
    %458 = vrot.lane.b32.xlu0 %v456, 64
    %v459 = vpop.permute.xlu0 %458
    %460 = vrot.lane.b32.xlu0 %v457, 64
    %v461 = vpop.permute.xlu0 %460
    %v462 = vmul.f32 %v456, %v459
    %v463 = vsel %vm277, %v457, %v461
    %v464 = vsel %vm277, %v461, %v457
    %v465 = vmul.f32 %v463, %v418
    %v466 = vadd.f32 %v465, %v462
    %v467 = vtanh.pop %v466
    %v468 = vmul.f32 %v464, %v467
    %v469 = vpack.c.bf16 %v468, %v468
    %470 = vmatpush.bf16.msra.mxu0 %v242
    %471 = vmatpush.bf16.msra.mxu0 %v240
    %472 = vmatpush.bf16.msra.mxu0 %v238
    %473 = vmatpush.bf16.msra.mxu0 %v236
    %474 = vmatpush.bf16.msra.mxu0 %v234
    %475 = vmatpush.bf16.msra.mxu0 %v232
    %476 = vmatpush.bf16.msra.mxu0 %v230
    %477 = vmatpush.bf16.msra.mxu0 %v228
    %478 = vmatmul.bf16.gmra.mxu0 %v469
    %v479 = vpop.f32.mrf.mxu0
    %v480 = vadd.f32 0.0, %v479
    %v481 = vpop.f32.mrf.mxu0
    %482 = vdwg.mxu0
    %483 = vmatpush.bf16.msra.mxu0 %v243
    %484 = vmatpush.bf16.msra.mxu0 %v241
    %485 = vmatpush.bf16.msra.mxu0 %v239
    %486 = vmatpush.bf16.msra.mxu0 %v237
    %487 = vmatpush.bf16.msra.mxu0 %v235
    %488 = vmatpush.bf16.msra.mxu0 %v233
    %489 = vmatpush.bf16.msra.mxu0 %v231
    %490 = vmatpush.bf16.msra.mxu0 %v229
    %491 = vmatmul.bf16.gmra.mxu0 %v469
    %v492 = vpop.f32.mrf.mxu0
    %v493 = vadd.f32 0.0, %v492
    %v494 = vpop.f32.mrf.mxu0
    %495 = vdwg.mxu0
    %v496 = vadd.f32 %v158, %v480
    %v497 = vadd.f32 %v187, %v493
    %v498 = vtanh.pop %v496
    %v499 = vtanh.pop %v497
    %v500 = vmul.f32 %v498, 0.5
    %v501 = vmul.f32 %v499, 0.5
    %v502 = vadd.f32 %v500, 0.5
    %v503 = vadd.f32 %v501, 0.5
    %v504 = vsel %vm275, %v498, %v502
    %v505 = vsel %vm276, %v499, %v503
    %506 = vrot.lane.b32.xlu0 %v504, 64
    %v507 = vpop.permute.xlu0 %506
    %508 = vrot.lane.b32.xlu0 %v505, 64
    %v509 = vpop.permute.xlu0 %508
    %v510 = vmul.f32 %v504, %v507
    %v511 = vsel %vm277, %v505, %v509
    %v512 = vsel %vm277, %v509, %v505
    %v513 = vmul.f32 %v511, %v466
    %v514 = vadd.f32 %v513, %v510
    %v515 = vtanh.pop %v514
    %v516 = vmul.f32 %v512, %v515
    %v517 = vpack.c.bf16 %v516, %v516
    %518 = vmatpush.bf16.msra.mxu0 %v242
    %519 = vmatpush.bf16.msra.mxu0 %v240
    %520 = vmatpush.bf16.msra.mxu0 %v238
    %521 = vmatpush.bf16.msra.mxu0 %v236
    %522 = vmatpush.bf16.msra.mxu0 %v234
    %523 = vmatpush.bf16.msra.mxu0 %v232
    %524 = vmatpush.bf16.msra.mxu0 %v230
    %525 = vmatpush.bf16.msra.mxu0 %v228
    %526 = vmatmul.bf16.gmra.mxu0 %v517
    %v527 = vpop.f32.mrf.mxu0
    %v528 = vadd.f32 0.0, %v527
    %v529 = vpop.f32.mrf.mxu0
    %530 = vdwg.mxu0
    %531 = vmatpush.bf16.msra.mxu0 %v243
    %532 = vmatpush.bf16.msra.mxu0 %v241
    %533 = vmatpush.bf16.msra.mxu0 %v239
    %534 = vmatpush.bf16.msra.mxu0 %v237
    %535 = vmatpush.bf16.msra.mxu0 %v235
    %536 = vmatpush.bf16.msra.mxu0 %v233
    %537 = vmatpush.bf16.msra.mxu0 %v231
    %538 = vmatpush.bf16.msra.mxu0 %v229
    %539 = vmatmul.bf16.gmra.mxu0 %v517
    %v540 = vpop.f32.mrf.mxu0
    %v541 = vadd.f32 0.0, %v540
    %v542 = vpop.f32.mrf.mxu0
    %543 = vdwg.mxu0
    %v544 = vadd.f32 %v160, %v528
    %v545 = vadd.f32 %v189, %v541
    %v546 = vtanh.pop %v544
    %v547 = vtanh.pop %v545
    %v548 = vmul.f32 %v546, 0.5
    %v549 = vmul.f32 %v547, 0.5
    %v550 = vadd.f32 %v548, 0.5
    %v551 = vadd.f32 %v549, 0.5
    %v552 = vsel %vm275, %v546, %v550
    %v553 = vsel %vm276, %v547, %v551
    %554 = vrot.lane.b32.xlu0 %v552, 64
    %v555 = vpop.permute.xlu0 %554
    %556 = vrot.lane.b32.xlu0 %v553, 64
    %v557 = vpop.permute.xlu0 %556
    %v558 = vmul.f32 %v552, %v555
    %v559 = vsel %vm277, %v553, %v557
    %v560 = vsel %vm277, %v557, %v553
    %v561 = vmul.f32 %v559, %v514
    %v562 = vadd.f32 %v561, %v558
    %v563 = vtanh.pop %v562
    %v564 = vmul.f32 %v560, %v563
    %v565 = vpack.c.bf16 %v564, %v564
    %566 = vmatpush.bf16.msra.mxu0 %v242
    %567 = vmatpush.bf16.msra.mxu0 %v240
    %568 = vmatpush.bf16.msra.mxu0 %v238
    %569 = vmatpush.bf16.msra.mxu0 %v236
    %570 = vmatpush.bf16.msra.mxu0 %v234
    %571 = vmatpush.bf16.msra.mxu0 %v232
    %572 = vmatpush.bf16.msra.mxu0 %v230
    %573 = vmatpush.bf16.msra.mxu0 %v228
    %574 = vmatmul.bf16.gmra.mxu0 %v565
    %v575 = vpop.f32.mrf.mxu0
    %v576 = vadd.f32 0.0, %v575
    %v577 = vpop.f32.mrf.mxu0
    %578 = vdwg.mxu0
    %579 = vmatpush.bf16.msra.mxu0 %v243
    %580 = vmatpush.bf16.msra.mxu0 %v241
    %581 = vmatpush.bf16.msra.mxu0 %v239
    %582 = vmatpush.bf16.msra.mxu0 %v237
    %583 = vmatpush.bf16.msra.mxu0 %v235
    %584 = vmatpush.bf16.msra.mxu0 %v233
    %585 = vmatpush.bf16.msra.mxu0 %v231
    %586 = vmatpush.bf16.msra.mxu0 %v229
    %587 = vmatmul.bf16.gmra.mxu0 %v565
    %v588 = vpop.f32.mrf.mxu0
    %v589 = vadd.f32 0.0, %v588
    %v590 = vpop.f32.mrf.mxu0
    %591 = vdwg.mxu0
    %v592 = vadd.f32 %v163, %v576
    %v593 = vadd.f32 %v192, %v589
    %v594 = vtanh.pop %v592
    %v595 = vtanh.pop %v593
    %v596 = vmul.f32 %v594, 0.5
    %v597 = vmul.f32 %v595, 0.5
    %v598 = vadd.f32 %v596, 0.5
    %v599 = vadd.f32 %v597, 0.5
    %v600 = vsel %vm275, %v594, %v598
    %v601 = vsel %vm276, %v595, %v599
    %602 = vrot.lane.b32.xlu0 %v600, 64
    %v603 = vpop.permute.xlu0 %602
    %604 = vrot.lane.b32.xlu0 %v601, 64
    %v605 = vpop.permute.xlu0 %604
    %v606 = vmul.f32 %v600, %v603
    %v607 = vsel %vm277, %v601, %v605
    %v608 = vsel %vm277, %v605, %v601
    %v609 = vmul.f32 %v607, %v562
    %v610 = vadd.f32 %v609, %v606
    %v611 = vtanh.pop %v610
    %v612 = vmul.f32 %v608, %v611
    %v613 = vpack.c.bf16 %v612, %v612
    %614 = vmatpush.bf16.msra.mxu0 %v242
    %615 = vmatpush.bf16.msra.mxu0 %v240
    %616 = vmatpush.bf16.msra.mxu0 %v238
    %617 = vmatpush.bf16.msra.mxu0 %v236
    %618 = vmatpush.bf16.msra.mxu0 %v234
    %619 = vmatpush.bf16.msra.mxu0 %v232
    %620 = vmatpush.bf16.msra.mxu0 %v230
    %621 = vmatpush.bf16.msra.mxu0 %v228
    %622 = vmatmul.bf16.gmra.mxu0 %v613
    %v623 = vpop.f32.mrf.mxu0
    %v624 = vadd.f32 0.0, %v623
    %v625 = vpop.f32.mrf.mxu0
    %626 = vdwg.mxu0
    %627 = vmatpush.bf16.msra.mxu0 %v243
    %628 = vmatpush.bf16.msra.mxu0 %v241
    %629 = vmatpush.bf16.msra.mxu0 %v239
    %630 = vmatpush.bf16.msra.mxu0 %v237
    %631 = vmatpush.bf16.msra.mxu0 %v235
    %632 = vmatpush.bf16.msra.mxu0 %v233
    %633 = vmatpush.bf16.msra.mxu0 %v231
    %634 = vmatpush.bf16.msra.mxu0 %v229
    %635 = vmatmul.bf16.gmra.mxu0 %v613
    %v636 = vpop.f32.mrf.mxu0
    %v637 = vadd.f32 0.0, %v636
    %v638 = vpop.f32.mrf.mxu0
    %639 = vdwg.mxu0
    %v640 = vadd.f32 %v165, %v624
    %v641 = vadd.f32 %v194, %v637
    %v642 = vtanh.pop %v640
    %v643 = vtanh.pop %v641
    %v644 = vmul.f32 %v642, 0.5
    %v645 = vmul.f32 %v643, 0.5
    %v646 = vadd.f32 %v644, 0.5
    %v647 = vadd.f32 %v645, 0.5
    %v648 = vsel %vm275, %v642, %v646
    %v649 = vsel %vm276, %v643, %v647
    %650 = vrot.lane.b32.xlu0 %v648, 64
    %v651 = vpop.permute.xlu0 %650
    %652 = vrot.lane.b32.xlu0 %v649, 64
    %v653 = vpop.permute.xlu0 %652
    %v654 = vmul.f32 %v648, %v651
    %v655 = vsel %vm277, %v649, %v653
    %v656 = vsel %vm277, %v653, %v649
    %v657 = vmul.f32 %v655, %v610
    %v658 = vadd.f32 %v657, %v654
    %v659 = vtanh.pop %v658
    %v660 = vmul.f32 %v656, %v659
    %v661 = vpack.c.bf16 %v660, %v660
    %v662 = vld [vmem:[%s5] sm:$0x1]
    %v664 = vperm.slane %v662, 0
    %666 = vmatpush.bf16.msra.mxu0 %v267
    %667 = vmatpush.bf16.msra.mxu0 %v266
    %668 = vmatpush.bf16.msra.mxu0 %v265
    %669 = vmatpush.bf16.msra.mxu0 %v264
    %670 = vmatpush.bf16.msra.mxu0 %v263
    %671 = vmatpush.bf16.msra.mxu0 %v262
    %672 = vmatpush.bf16.msra.mxu0 %v261
    %673 = vmatpush.bf16.msra.mxu0 %v260
    %674 = vmatmul.bf16.gmra.mxu0 %v661
    %v675 = vpop.f32.mrf.mxu0
    %v676 = vadd.f32 %v664, %v675
    %v677 = vpop.f32.mrf.mxu0
    %678 = vdwg.mxu0
    %679 = vst [vmem:[#allocation10] sm:$0xff] %v676
    // Predicated region
    $region42: #{tpu_custom_call.1} parent=1 // pred_check
      _
    $region43: #{tpu_custom_call.1} parent=1 // pred_check_branch
      %681 = sbr.rel (0) target = $region45
    $region44: #{tpu_custom_call.1} parent=1 // pred_region
      %683 = vsyncadd [#allocation4], 0
      %s685 = sshll.u32 [#allocation10], 4
      %s686 = int_to_ptr.vmem [resolvable:$true] %s685
      %s687 = sshll.u32 %s6, 4
      %s688 = int_to_ptr.hbm [resolvable:$true] %s687
      %690 = dma.vmem_to_hbm [thread:$0]  %s686, 128, %s688, [#allocation4]
    $region45: #{tpu_custom_call.1} parent=1 // pred_fallthru
      _
    // Predicated region
    $region46: #{tpu_custom_call.1} parent=1 // pred_check
      _
    $region47: #{tpu_custom_call.1} parent=1 // pred_check_branch
      %692 = sbr.rel (0) target = $region49
    $region48: #{tpu_custom_call.1} parent=1 // pred_region
      %694 = dma.done [#allocation4], 128
    $region49: #{tpu_custom_call.1} parent=1 // pred_fallthru
      _
    %695 = vsyncpa [#allocation3], 1
    %696 = vsyncpa [#allocation6], 1
    %697 = vsyncpa [#allocation9], 1
    %698 = vsyncpa [#allocation4], 1

</llo_original>
